<compile_context>
chip_gen: v7x
topology: tpu7x:2x2x1
jax: 0.10.0
libtpu: 0.0.40
codegen_flags: <defaults>
</compile_context>

<pallas_src>
import jax
import jax.numpy as jnp
from jax.experimental import pallas as pl
from jax.experimental.pallas import tpu as pltpu


def _round_up(x, m):
    return ((x + m - 1) // m) * m


def _fc_row(rows, w_ref, b_ref, j):
    """out_j = b[j] + sum_k w[j,k] * rows[k]; rows are (1, TILE_B) vregs,
    w/b are SMEM scalars -> pure scalar x vector FMAs on the VPU."""
    acc = w_ref[j, 0] * rows[0]
    for k in range(1, len(rows)):
        acc = acc + w_ref[j, k] * rows[k]
    return acc + b_ref[j]


def _fusion_kernel(x_ref, w1_ref, b1_ref, w2_ref, b2_ref, o_ref):
    f32 = jnp.float32
    x = x_ref[...].astype(f32)                     # (18, TILE_B), lane-dense
    rows = [x[r:r + 1, :] for r in range(18)]      # each (1, TILE_B)
    whole_rows = rows[:3]                          # rows 0..2  : whole_feature
    fuse_rows = rows[3:]                           # rows 3..17 : fc1 input order

    # fc1 + ReLU (dropout = identity in eval mode).
    h_rows = [jnp.maximum(_fc_row(fuse_rows, w1_ref, b1_ref, j), 0.0)
              for j in range(3)]

    # relu(cat(whole, h)): h is already non-negative, only `whole` needs ReLU.
    z_rows = [jnp.maximum(r, 0.0) for r in whole_rows] + h_rows

    # fc_2.
    out_rows = [_fc_row(z_rows, w2_ref, b2_ref, j) for j in range(3)]
    o_ref[...] = jnp.concatenate(out_rows, axis=0).astype(o_ref.dtype)


def _choose_tile(batch, *, max_tile_cols=65536):
    """Batch (lane) tile: full batch when small, else a multiple of 512 sized
    to give >= ~8 grid steps, capped so 2x-buffered VMEM stays ~11 MiB."""
    if batch <= 1024:
        return batch                               # single block, full extent
    tile = _round_up(pl.cdiv(batch, 8), 512)
    return max(512, min(tile, max_tile_cols))


def fusionmodel_forward(whole_feature, l_eye_feature, l_lips_feature,
                        nose_feature, r_eye_feature, r_lips_feature,
                        fc1_w, fc1_b, fc2_w, fc2_b, *, max_tile_cols=65536):
    """Fused forward. Features: (B, 3) each (or (3,) unbatched). Returns (B, 3)."""
    feats = [whole_feature, l_eye_feature, l_lips_feature,
             nose_feature, r_eye_feature, r_lips_feature]
    squeeze = feats[0].ndim == 1
    feats = [f[None, :] if f.ndim == 1 else f for f in feats]
    B, C = feats[0].shape
    if C != 3:
        raise ValueError("each face-part feature must have 3 channels")
    dtype = feats[0].dtype

    # Lane-dense packing: one (18, B) array -> one contiguous input DMA/step.
    # Rows 0..2 = whole, rows 3..17 = [l_eye, l_lips, nose, r_eye, r_lips]
    # (exactly the fc1 concat order).
    packed = jnp.concatenate(feats, axis=-1).T     # (18, B)

    tile = _choose_tile(B, max_tile_cols=max_tile_cols)
    grid = (pl.cdiv(B, tile),)

    smem_spec = pl.BlockSpec(memory_space=pltpu.MemorySpace.SMEM)

    out_t = pl.pallas_call(
        _fusion_kernel,
        out_shape=jax.ShapeDtypeStruct((3, B), dtype),
        grid=grid,
        in_specs=[
            pl.BlockSpec((18, tile), lambda i: (0, i)),   # packed features
            smem_spec,                                    # fc1 weight (3,15)
            smem_spec,                                    # fc1 bias   (3,)
            smem_spec,                                    # fc2 weight (3,6)
            smem_spec,                                    # fc2 bias   (3,)
        ],
        out_specs=pl.BlockSpec((3, tile), lambda i: (0, i)),
        compiler_params=pltpu.CompilerParams(
            dimension_semantics=("parallel",),
            vmem_limit_bytes=48 * 1024 * 1024,
        ),
        cost_estimate=pl.CostEstimate(
            flops=132 * B, transcendentals=0, bytes_accessed=84 * B),
    )(packed,
      fc1_w.astype(jnp.float32), fc1_b.astype(jnp.float32),
      fc2_w.astype(jnp.float32), fc2_b.astype(jnp.float32))

    out = out_t.T                                  # (B, 3)
    return out[0] if squeeze else out


if __name__ == "__main__":
    key = jax.random.PRNGKey(0)
    ks = jax.random.split(key, 10)

    B = 8  # batch of samples; each facial-part feature is 3-wide
    whole  = jax.random.normal(ks[0], (B, 3), jnp.float32)
    l_eye  = jax.random.normal(ks[1], (B, 3), jnp.float32)
    l_lips = jax.random.normal(ks[2], (B, 3), jnp.float32)
    nose   = jax.random.normal(ks[3], (B, 3), jnp.float32)
    r_eye  = jax.random.normal(ks[4], (B, 3), jnp.float32)
    r_lips = jax.random.normal(ks[5], (B, 3), jnp.float32)

    # Deterministic Linear params (PyTorch default U(-1/sqrt(fan_in), +...)).
    fc1_w = jax.random.uniform(ks[6], (3, 15), jnp.float32, -1 / 15**0.5, 1 / 15**0.5)
    fc1_b = jax.random.uniform(ks[7], (3,),    jnp.float32, -1 / 15**0.5, 1 / 15**0.5)
    fc2_w = jax.random.uniform(ks[8], (3, 6),  jnp.float32, -1 / 6**0.5, 1 / 6**0.5)
    fc2_b = jax.random.uniform(ks[9], (3,),    jnp.float32, -1 / 6**0.5, 1 / 6**0.5)

    out = fusionmodel_forward(whole, l_eye, l_lips, nose, r_eye, r_lips,
                              fc1_w, fc1_b, fc2_w, fc2_b)
    out = jax.block_until_ready(out)

    # Pure-JAX reference of the PyTorch forward (dropout = identity in eval).
    fuse = jnp.concatenate([l_eye, l_lips, nose, r_eye, r_lips], axis=-1)
    h = jnp.maximum(fuse @ fc1_w.T + fc1_b, 0.0)
    z = jnp.maximum(jnp.concatenate([whole, h], axis=-1), 0.0)
    ref = z @ fc2_w.T + fc2_b

    assert out.shape == (B, 3)
    assert jnp.allclose(out, ref, atol=1e-5, rtol=1e-5), "mismatch vs reference"
    print("KERNEL_OK")
</pallas_src>

<mosaic_0001>
module attributes {stable_mosaic.version = 11 : i64} {
  func.func @_fusion_kernel(%arg0: i32, %arg1: memref<18x8xf32, #tpu.memory_space<vmem>>, %arg2: memref<3x15xf32, #tpu.memory_space<smem>>, %arg3: memref<3xf32, #tpu.memory_space<smem>>, %arg4: memref<3x6xf32, #tpu.memory_space<smem>>, %arg5: memref<3xf32, #tpu.memory_space<smem>>, %arg6: memref<3x8xf32, #tpu.memory_space<vmem>>) attributes {dimension_semantics = [#tpu.dimension_semantics<parallel>], iteration_bounds = array<i64: 1>, scalar_prefetch = 0 : i64, scratch_operands = 0 : i64, tpu.core_type = #tpu.core_type<tc>, window_params = [{transform_indices = @transform_0, window_bounds = array<i64: 18, 8>}, {transform_indices = @transform_1, window_bounds = array<i64: 3, 15>}, {transform_indices = @transform_2, window_bounds = array<i64: 3>}, {transform_indices = @transform_3, window_bounds = array<i64: 3, 6>}, {transform_indices = @transform_4, window_bounds = array<i64: 3>}, {transform_indices = @transform_5, window_bounds = array<i64: 3, 8>}]} {
    %c0 = arith.constant 0 : index
    %c0_0 = arith.constant 0 : index
    %0 = vector.load %arg1[%c0, %c0_0] : memref<18x8xf32, #tpu.memory_space<vmem>>, vector<18x8xf32>
    %1 = vector.extract_strided_slice %0 {offsets = [0, 0], sizes = [1, 8], strides = [1, 1]} : vector<18x8xf32> to vector<1x8xf32>
    %2 = vector.extract_strided_slice %0 {offsets = [1, 0], sizes = [1, 8], strides = [1, 1]} : vector<18x8xf32> to vector<1x8xf32>
    %3 = vector.extract_strided_slice %0 {offsets = [2, 0], sizes = [1, 8], strides = [1, 1]} : vector<18x8xf32> to vector<1x8xf32>
    %4 = vector.extract_strided_slice %0 {offsets = [3, 0], sizes = [1, 8], strides = [1, 1]} : vector<18x8xf32> to vector<1x8xf32>
    %5 = vector.extract_strided_slice %0 {offsets = [4, 0], sizes = [1, 8], strides = [1, 1]} : vector<18x8xf32> to vector<1x8xf32>
    %6 = vector.extract_strided_slice %0 {offsets = [5, 0], sizes = [1, 8], strides = [1, 1]} : vector<18x8xf32> to vector<1x8xf32>
    %7 = vector.extract_strided_slice %0 {offsets = [6, 0], sizes = [1, 8], strides = [1, 1]} : vector<18x8xf32> to vector<1x8xf32>
    %8 = vector.extract_strided_slice %0 {offsets = [7, 0], sizes = [1, 8], strides = [1, 1]} : vector<18x8xf32> to vector<1x8xf32>
    %9 = vector.extract_strided_slice %0 {offsets = [8, 0], sizes = [1, 8], strides = [1, 1]} : vector<18x8xf32> to vector<1x8xf32>
    %10 = vector.extract_strided_slice %0 {offsets = [9, 0], sizes = [1, 8], strides = [1, 1]} : vector<18x8xf32> to vector<1x8xf32>
    %11 = vector.extract_strided_slice %0 {offsets = [10, 0], sizes = [1, 8], strides = [1, 1]} : vector<18x8xf32> to vector<1x8xf32>
    %12 = vector.extract_strided_slice %0 {offsets = [11, 0], sizes = [1, 8], strides = [1, 1]} : vector<18x8xf32> to vector<1x8xf32>
    %13 = vector.extract_strided_slice %0 {offsets = [12, 0], sizes = [1, 8], strides = [1, 1]} : vector<18x8xf32> to vector<1x8xf32>
    %14 = vector.extract_strided_slice %0 {offsets = [13, 0], sizes = [1, 8], strides = [1, 1]} : vector<18x8xf32> to vector<1x8xf32>
    %15 = vector.extract_strided_slice %0 {offsets = [14, 0], sizes = [1, 8], strides = [1, 1]} : vector<18x8xf32> to vector<1x8xf32>
    %16 = vector.extract_strided_slice %0 {offsets = [15, 0], sizes = [1, 8], strides = [1, 1]} : vector<18x8xf32> to vector<1x8xf32>
    %17 = vector.extract_strided_slice %0 {offsets = [16, 0], sizes = [1, 8], strides = [1, 1]} : vector<18x8xf32> to vector<1x8xf32>
    %18 = vector.extract_strided_slice %0 {offsets = [17, 0], sizes = [1, 8], strides = [1, 1]} : vector<18x8xf32> to vector<1x8xf32>
    %c0_1 = arith.constant 0 : index
    %c0_2 = arith.constant 0 : index
    %19 = memref.load %arg2[%c0_1, %c0_2] : memref<3x15xf32, #tpu.memory_space<smem>>
    %20 = vector.broadcast %19 : f32 to vector<1x8xf32>
    %21 = arith.mulf %20, %4 : vector<1x8xf32>
    %c0_3 = arith.constant 0 : index
    %c1 = arith.constant 1 : index
    %22 = memref.load %arg2[%c0_3, %c1] : memref<3x15xf32, #tpu.memory_space<smem>>
    %23 = vector.broadcast %22 : f32 to vector<1x8xf32>
    %24 = arith.mulf %23, %5 : vector<1x8xf32>
    %25 = arith.addf %21, %24 : vector<1x8xf32>
    %c0_4 = arith.constant 0 : index
    %c2 = arith.constant 2 : index
    %26 = memref.load %arg2[%c0_4, %c2] : memref<3x15xf32, #tpu.memory_space<smem>>
    %27 = vector.broadcast %26 : f32 to vector<1x8xf32>
    %28 = arith.mulf %27, %6 : vector<1x8xf32>
    %29 = arith.addf %25, %28 : vector<1x8xf32>
    %c0_5 = arith.constant 0 : index
    %c3 = arith.constant 3 : index
    %30 = memref.load %arg2[%c0_5, %c3] : memref<3x15xf32, #tpu.memory_space<smem>>
    %31 = vector.broadcast %30 : f32 to vector<1x8xf32>
    %32 = arith.mulf %31, %7 : vector<1x8xf32>
    %33 = arith.addf %29, %32 : vector<1x8xf32>
    %c0_6 = arith.constant 0 : index
    %c4 = arith.constant 4 : index
    %34 = memref.load %arg2[%c0_6, %c4] : memref<3x15xf32, #tpu.memory_space<smem>>
    %35 = vector.broadcast %34 : f32 to vector<1x8xf32>
    %36 = arith.mulf %35, %8 : vector<1x8xf32>
    %37 = arith.addf %33, %36 : vector<1x8xf32>
    %c0_7 = arith.constant 0 : index
    %c5 = arith.constant 5 : index
    %38 = memref.load %arg2[%c0_7, %c5] : memref<3x15xf32, #tpu.memory_space<smem>>
    %39 = vector.broadcast %38 : f32 to vector<1x8xf32>
    %40 = arith.mulf %39, %9 : vector<1x8xf32>
    %41 = arith.addf %37, %40 : vector<1x8xf32>
    %c0_8 = arith.constant 0 : index
    %c6 = arith.constant 6 : index
    %42 = memref.load %arg2[%c0_8, %c6] : memref<3x15xf32, #tpu.memory_space<smem>>
    %43 = vector.broadcast %42 : f32 to vector<1x8xf32>
    %44 = arith.mulf %43, %10 : vector<1x8xf32>
    %45 = arith.addf %41, %44 : vector<1x8xf32>
    %c0_9 = arith.constant 0 : index
    %c7 = arith.constant 7 : index
    %46 = memref.load %arg2[%c0_9, %c7] : memref<3x15xf32, #tpu.memory_space<smem>>
    %47 = vector.broadcast %46 : f32 to vector<1x8xf32>
    %48 = arith.mulf %47, %11 : vector<1x8xf32>
    %49 = arith.addf %45, %48 : vector<1x8xf32>
    %c0_10 = arith.constant 0 : index
    %c8 = arith.constant 8 : index
    %50 = memref.load %arg2[%c0_10, %c8] : memref<3x15xf32, #tpu.memory_space<smem>>
    %51 = vector.broadcast %50 : f32 to vector<1x8xf32>
    %52 = arith.mulf %51, %12 : vector<1x8xf32>
    %53 = arith.addf %49, %52 : vector<1x8xf32>
    %c0_11 = arith.constant 0 : index
    %c9 = arith.constant 9 : index
    %54 = memref.load %arg2[%c0_11, %c9] : memref<3x15xf32, #tpu.memory_space<smem>>
    %55 = vector.broadcast %54 : f32 to vector<1x8xf32>
    %56 = arith.mulf %55, %13 : vector<1x8xf32>
    %57 = arith.addf %53, %56 : vector<1x8xf32>
    %c0_12 = arith.constant 0 : index
    %c10 = arith.constant 10 : index
    %58 = memref.load %arg2[%c0_12, %c10] : memref<3x15xf32, #tpu.memory_space<smem>>
    %59 = vector.broadcast %58 : f32 to vector<1x8xf32>
    %60 = arith.mulf %59, %14 : vector<1x8xf32>
    %61 = arith.addf %57, %60 : vector<1x8xf32>
    %c0_13 = arith.constant 0 : index
    %c11 = arith.constant 11 : index
    %62 = memref.load %arg2[%c0_13, %c11] : memref<3x15xf32, #tpu.memory_space<smem>>
    %63 = vector.broadcast %62 : f32 to vector<1x8xf32>
    %64 = arith.mulf %63, %15 : vector<1x8xf32>
    %65 = arith.addf %61, %64 : vector<1x8xf32>
    %c0_14 = arith.constant 0 : index
    %c12 = arith.constant 12 : index
    %66 = memref.load %arg2[%c0_14, %c12] : memref<3x15xf32, #tpu.memory_space<smem>>
    %67 = vector.broadcast %66 : f32 to vector<1x8xf32>
    %68 = arith.mulf %67, %16 : vector<1x8xf32>
    %69 = arith.addf %65, %68 : vector<1x8xf32>
    %c0_15 = arith.constant 0 : index
    %c13 = arith.constant 13 : index
    %70 = memref.load %arg2[%c0_15, %c13] : memref<3x15xf32, #tpu.memory_space<smem>>
    %71 = vector.broadcast %70 : f32 to vector<1x8xf32>
    %72 = arith.mulf %71, %17 : vector<1x8xf32>
    %73 = arith.addf %69, %72 : vector<1x8xf32>
    %c0_16 = arith.constant 0 : index
    %c14 = arith.constant 14 : index
    %74 = memref.load %arg2[%c0_16, %c14] : memref<3x15xf32, #tpu.memory_space<smem>>
    %75 = vector.broadcast %74 : f32 to vector<1x8xf32>
    %76 = arith.mulf %75, %18 : vector<1x8xf32>
    %77 = arith.addf %73, %76 : vector<1x8xf32>
    %c0_17 = arith.constant 0 : index
    %78 = memref.load %arg3[%c0_17] : memref<3xf32, #tpu.memory_space<smem>>
    %79 = vector.broadcast %78 : f32 to vector<1x8xf32>
    %80 = arith.addf %77, %79 : vector<1x8xf32>
    %cst = arith.constant 0.000000e+00 : f32
    %81 = vector.broadcast %cst : f32 to vector<1x8xf32>
    %82 = arith.maximumf %80, %81 : vector<1x8xf32>
    %c1_18 = arith.constant 1 : index
    %c0_19 = arith.constant 0 : index
    %83 = memref.load %arg2[%c1_18, %c0_19] : memref<3x15xf32, #tpu.memory_space<smem>>
    %84 = vector.broadcast %83 : f32 to vector<1x8xf32>
    %85 = arith.mulf %84, %4 : vector<1x8xf32>
    %c1_20 = arith.constant 1 : index
    %c1_21 = arith.constant 1 : index
    %86 = memref.load %arg2[%c1_20, %c1_21] : memref<3x15xf32, #tpu.memory_space<smem>>
    %87 = vector.broadcast %86 : f32 to vector<1x8xf32>
    %88 = arith.mulf %87, %5 : vector<1x8xf32>
    %89 = arith.addf %85, %88 : vector<1x8xf32>
    %c1_22 = arith.constant 1 : index
    %c2_23 = arith.constant 2 : index
    %90 = memref.load %arg2[%c1_22, %c2_23] : memref<3x15xf32, #tpu.memory_space<smem>>
    %91 = vector.broadcast %90 : f32 to vector<1x8xf32>
    %92 = arith.mulf %91, %6 : vector<1x8xf32>
    %93 = arith.addf %89, %92 : vector<1x8xf32>
    %c1_24 = arith.constant 1 : index
    %c3_25 = arith.constant 3 : index
    %94 = memref.load %arg2[%c1_24, %c3_25] : memref<3x15xf32, #tpu.memory_space<smem>>
    %95 = vector.broadcast %94 : f32 to vector<1x8xf32>
    %96 = arith.mulf %95, %7 : vector<1x8xf32>
    %97 = arith.addf %93, %96 : vector<1x8xf32>
    %c1_26 = arith.constant 1 : index
    %c4_27 = arith.constant 4 : index
    %98 = memref.load %arg2[%c1_26, %c4_27] : memref<3x15xf32, #tpu.memory_space<smem>>
    %99 = vector.broadcast %98 : f32 to vector<1x8xf32>
    %100 = arith.mulf %99, %8 : vector<1x8xf32>
    %101 = arith.addf %97, %100 : vector<1x8xf32>
    %c1_28 = arith.constant 1 : index
    %c5_29 = arith.constant 5 : index
    %102 = memref.load %arg2[%c1_28, %c5_29] : memref<3x15xf32, #tpu.memory_space<smem>>
    %103 = vector.broadcast %102 : f32 to vector<1x8xf32>
    %104 = arith.mulf %103, %9 : vector<1x8xf32>
    %105 = arith.addf %101, %104 : vector<1x8xf32>
    %c1_30 = arith.constant 1 : index
    %c6_31 = arith.constant 6 : index
    %106 = memref.load %arg2[%c1_30, %c6_31] : memref<3x15xf32, #tpu.memory_space<smem>>
    %107 = vector.broadcast %106 : f32 to vector<1x8xf32>
    %108 = arith.mulf %107, %10 : vector<1x8xf32>
    %109 = arith.addf %105, %108 : vector<1x8xf32>
    %c1_32 = arith.constant 1 : index
    %c7_33 = arith.constant 7 : index
    %110 = memref.load %arg2[%c1_32, %c7_33] : memref<3x15xf32, #tpu.memory_space<smem>>
    %111 = vector.broadcast %110 : f32 to vector<1x8xf32>
    %112 = arith.mulf %111, %11 : vector<1x8xf32>
    %113 = arith.addf %109, %112 : vector<1x8xf32>
    %c1_34 = arith.constant 1 : index
    %c8_35 = arith.constant 8 : index
    %114 = memref.load %arg2[%c1_34, %c8_35] : memref<3x15xf32, #tpu.memory_space<smem>>
    %115 = vector.broadcast %114 : f32 to vector<1x8xf32>
    %116 = arith.mulf %115, %12 : vector<1x8xf32>
    %117 = arith.addf %113, %116 : vector<1x8xf32>
    %c1_36 = arith.constant 1 : index
    %c9_37 = arith.constant 9 : index
    %118 = memref.load %arg2[%c1_36, %c9_37] : memref<3x15xf32, #tpu.memory_space<smem>>
    %119 = vector.broadcast %118 : f32 to vector<1x8xf32>
    %120 = arith.mulf %119, %13 : vector<1x8xf32>
    %121 = arith.addf %117, %120 : vector<1x8xf32>
    %c1_38 = arith.constant 1 : index
    %c10_39 = arith.constant 10 : index
    %122 = memref.load %arg2[%c1_38, %c10_39] : memref<3x15xf32, #tpu.memory_space<smem>>
    %123 = vector.broadcast %122 : f32 to vector<1x8xf32>
    %124 = arith.mulf %123, %14 : vector<1x8xf32>
    %125 = arith.addf %121, %124 : vector<1x8xf32>
    %c1_40 = arith.constant 1 : index
    %c11_41 = arith.constant 11 : index
    %126 = memref.load %arg2[%c1_40, %c11_41] : memref<3x15xf32, #tpu.memory_space<smem>>
    %127 = vector.broadcast %126 : f32 to vector<1x8xf32>
    %128 = arith.mulf %127, %15 : vector<1x8xf32>
    %129 = arith.addf %125, %128 : vector<1x8xf32>
    %c1_42 = arith.constant 1 : index
    %c12_43 = arith.constant 12 : index
    %130 = memref.load %arg2[%c1_42, %c12_43] : memref<3x15xf32, #tpu.memory_space<smem>>
    %131 = vector.broadcast %130 : f32 to vector<1x8xf32>
    %132 = arith.mulf %131, %16 : vector<1x8xf32>
    %133 = arith.addf %129, %132 : vector<1x8xf32>
    %c1_44 = arith.constant 1 : index
    %c13_45 = arith.constant 13 : index
    %134 = memref.load %arg2[%c1_44, %c13_45] : memref<3x15xf32, #tpu.memory_space<smem>>
    %135 = vector.broadcast %134 : f32 to vector<1x8xf32>
    %136 = arith.mulf %135, %17 : vector<1x8xf32>
    %137 = arith.addf %133, %136 : vector<1x8xf32>
    %c1_46 = arith.constant 1 : index
    %c14_47 = arith.constant 14 : index
    %138 = memref.load %arg2[%c1_46, %c14_47] : memref<3x15xf32, #tpu.memory_space<smem>>
    %139 = vector.broadcast %138 : f32 to vector<1x8xf32>
    %140 = arith.mulf %139, %18 : vector<1x8xf32>
    %141 = arith.addf %137, %140 : vector<1x8xf32>
    %c1_48 = arith.constant 1 : index
    %142 = memref.load %arg3[%c1_48] : memref<3xf32, #tpu.memory_space<smem>>
    %143 = vector.broadcast %142 : f32 to vector<1x8xf32>
    %144 = arith.addf %141, %143 : vector<1x8xf32>
    %cst_49 = arith.constant 0.000000e+00 : f32
    %145 = vector.broadcast %cst_49 : f32 to vector<1x8xf32>
    %146 = arith.maximumf %144, %145 : vector<1x8xf32>
    %c2_50 = arith.constant 2 : index
    %c0_51 = arith.constant 0 : index
    %147 = memref.load %arg2[%c2_50, %c0_51] : memref<3x15xf32, #tpu.memory_space<smem>>
    %148 = vector.broadcast %147 : f32 to vector<1x8xf32>
    %149 = arith.mulf %148, %4 : vector<1x8xf32>
    %c2_52 = arith.constant 2 : index
    %c1_53 = arith.constant 1 : index
    %150 = memref.load %arg2[%c2_52, %c1_53] : memref<3x15xf32, #tpu.memory_space<smem>>
    %151 = vector.broadcast %150 : f32 to vector<1x8xf32>
    %152 = arith.mulf %151, %5 : vector<1x8xf32>
    %153 = arith.addf %149, %152 : vector<1x8xf32>
    %c2_54 = arith.constant 2 : index
    %c2_55 = arith.constant 2 : index
    %154 = memref.load %arg2[%c2_54, %c2_55] : memref<3x15xf32, #tpu.memory_space<smem>>
    %155 = vector.broadcast %154 : f32 to vector<1x8xf32>
    %156 = arith.mulf %155, %6 : vector<1x8xf32>
    %157 = arith.addf %153, %156 : vector<1x8xf32>
    %c2_56 = arith.constant 2 : index
    %c3_57 = arith.constant 3 : index
    %158 = memref.load %arg2[%c2_56, %c3_57] : memref<3x15xf32, #tpu.memory_space<smem>>
    %159 = vector.broadcast %158 : f32 to vector<1x8xf32>
    %160 = arith.mulf %159, %7 : vector<1x8xf32>
    %161 = arith.addf %157, %160 : vector<1x8xf32>
    %c2_58 = arith.constant 2 : index
    %c4_59 = arith.constant 4 : index
    %162 = memref.load %arg2[%c2_58, %c4_59] : memref<3x15xf32, #tpu.memory_space<smem>>
    %163 = vector.broadcast %162 : f32 to vector<1x8xf32>
    %164 = arith.mulf %163, %8 : vector<1x8xf32>
    %165 = arith.addf %161, %164 : vector<1x8xf32>
    %c2_60 = arith.constant 2 : index
    %c5_61 = arith.constant 5 : index
    %166 = memref.load %arg2[%c2_60, %c5_61] : memref<3x15xf32, #tpu.memory_space<smem>>
    %167 = vector.broadcast %166 : f32 to vector<1x8xf32>
    %168 = arith.mulf %167, %9 : vector<1x8xf32>
    %169 = arith.addf %165, %168 : vector<1x8xf32>
    %c2_62 = arith.constant 2 : index
    %c6_63 = arith.constant 6 : index
    %170 = memref.load %arg2[%c2_62, %c6_63] : memref<3x15xf32, #tpu.memory_space<smem>>
    %171 = vector.broadcast %170 : f32 to vector<1x8xf32>
    %172 = arith.mulf %171, %10 : vector<1x8xf32>
    %173 = arith.addf %169, %172 : vector<1x8xf32>
    %c2_64 = arith.constant 2 : index
    %c7_65 = arith.constant 7 : index
    %174 = memref.load %arg2[%c2_64, %c7_65] : memref<3x15xf32, #tpu.memory_space<smem>>
    %175 = vector.broadcast %174 : f32 to vector<1x8xf32>
    %176 = arith.mulf %175, %11 : vector<1x8xf32>
    %177 = arith.addf %173, %176 : vector<1x8xf32>
    %c2_66 = arith.constant 2 : index
    %c8_67 = arith.constant 8 : index
    %178 = memref.load %arg2[%c2_66, %c8_67] : memref<3x15xf32, #tpu.memory_space<smem>>
    %179 = vector.broadcast %178 : f32 to vector<1x8xf32>
    %180 = arith.mulf %179, %12 : vector<1x8xf32>
    %181 = arith.addf %177, %180 : vector<1x8xf32>
    %c2_68 = arith.constant 2 : index
    %c9_69 = arith.constant 9 : index
    %182 = memref.load %arg2[%c2_68, %c9_69] : memref<3x15xf32, #tpu.memory_space<smem>>
    %183 = vector.broadcast %182 : f32 to vector<1x8xf32>
    %184 = arith.mulf %183, %13 : vector<1x8xf32>
    %185 = arith.addf %181, %184 : vector<1x8xf32>
    %c2_70 = arith.constant 2 : index
    %c10_71 = arith.constant 10 : index
    %186 = memref.load %arg2[%c2_70, %c10_71] : memref<3x15xf32, #tpu.memory_space<smem>>
    %187 = vector.broadcast %186 : f32 to vector<1x8xf32>
    %188 = arith.mulf %187, %14 : vector<1x8xf32>
    %189 = arith.addf %185, %188 : vector<1x8xf32>
    %c2_72 = arith.constant 2 : index
    %c11_73 = arith.constant 11 : index
    %190 = memref.load %arg2[%c2_72, %c11_73] : memref<3x15xf32, #tpu.memory_space<smem>>
    %191 = vector.broadcast %190 : f32 to vector<1x8xf32>
    %192 = arith.mulf %191, %15 : vector<1x8xf32>
    %193 = arith.addf %189, %192 : vector<1x8xf32>
    %c2_74 = arith.constant 2 : index
    %c12_75 = arith.constant 12 : index
    %194 = memref.load %arg2[%c2_74, %c12_75] : memref<3x15xf32, #tpu.memory_space<smem>>
    %195 = vector.broadcast %194 : f32 to vector<1x8xf32>
    %196 = arith.mulf %195, %16 : vector<1x8xf32>
    %197 = arith.addf %193, %196 : vector<1x8xf32>
    %c2_76 = arith.constant 2 : index
    %c13_77 = arith.constant 13 : index
    %198 = memref.load %arg2[%c2_76, %c13_77] : memref<3x15xf32, #tpu.memory_space<smem>>
    %199 = vector.broadcast %198 : f32 to vector<1x8xf32>
    %200 = arith.mulf %199, %17 : vector<1x8xf32>
    %201 = arith.addf %197, %200 : vector<1x8xf32>
    %c2_78 = arith.constant 2 : index
    %c14_79 = arith.constant 14 : index
    %202 = memref.load %arg2[%c2_78, %c14_79] : memref<3x15xf32, #tpu.memory_space<smem>>
    %203 = vector.broadcast %202 : f32 to vector<1x8xf32>
    %204 = arith.mulf %203, %18 : vector<1x8xf32>
    %205 = arith.addf %201, %204 : vector<1x8xf32>
    %c2_80 = arith.constant 2 : index
    %206 = memref.load %arg3[%c2_80] : memref<3xf32, #tpu.memory_space<smem>>
    %207 = vector.broadcast %206 : f32 to vector<1x8xf32>
    %208 = arith.addf %205, %207 : vector<1x8xf32>
    %cst_81 = arith.constant 0.000000e+00 : f32
    %209 = vector.broadcast %cst_81 : f32 to vector<1x8xf32>
    %210 = arith.maximumf %208, %209 : vector<1x8xf32>
    %cst_82 = arith.constant 0.000000e+00 : f32
    %211 = vector.broadcast %cst_82 : f32 to vector<1x8xf32>
    %212 = arith.maximumf %1, %211 : vector<1x8xf32>
    %cst_83 = arith.constant 0.000000e+00 : f32
    %213 = vector.broadcast %cst_83 : f32 to vector<1x8xf32>
    %214 = arith.maximumf %2, %213 : vector<1x8xf32>
    %cst_84 = arith.constant 0.000000e+00 : f32
    %215 = vector.broadcast %cst_84 : f32 to vector<1x8xf32>
    %216 = arith.maximumf %3, %215 : vector<1x8xf32>
    %c0_85 = arith.constant 0 : index
    %c0_86 = arith.constant 0 : index
    %217 = memref.load %arg4[%c0_85, %c0_86] : memref<3x6xf32, #tpu.memory_space<smem>>
    %218 = vector.broadcast %217 : f32 to vector<1x8xf32>
    %219 = arith.mulf %218, %212 : vector<1x8xf32>
    %c0_87 = arith.constant 0 : index
    %c1_88 = arith.constant 1 : index
    %220 = memref.load %arg4[%c0_87, %c1_88] : memref<3x6xf32, #tpu.memory_space<smem>>
    %221 = vector.broadcast %220 : f32 to vector<1x8xf32>
    %222 = arith.mulf %221, %214 : vector<1x8xf32>
    %223 = arith.addf %219, %222 : vector<1x8xf32>
    %c0_89 = arith.constant 0 : index
    %c2_90 = arith.constant 2 : index
    %224 = memref.load %arg4[%c0_89, %c2_90] : memref<3x6xf32, #tpu.memory_space<smem>>
    %225 = vector.broadcast %224 : f32 to vector<1x8xf32>
    %226 = arith.mulf %225, %216 : vector<1x8xf32>
    %227 = arith.addf %223, %226 : vector<1x8xf32>
    %c0_91 = arith.constant 0 : index
    %c3_92 = arith.constant 3 : index
    %228 = memref.load %arg4[%c0_91, %c3_92] : memref<3x6xf32, #tpu.memory_space<smem>>
    %229 = vector.broadcast %228 : f32 to vector<1x8xf32>
    %230 = arith.mulf %229, %82 : vector<1x8xf32>
    %231 = arith.addf %227, %230 : vector<1x8xf32>
    %c0_93 = arith.constant 0 : index
    %c4_94 = arith.constant 4 : index
    %232 = memref.load %arg4[%c0_93, %c4_94] : memref<3x6xf32, #tpu.memory_space<smem>>
    %233 = vector.broadcast %232 : f32 to vector<1x8xf32>
    %234 = arith.mulf %233, %146 : vector<1x8xf32>
    %235 = arith.addf %231, %234 : vector<1x8xf32>
    %c0_95 = arith.constant 0 : index
    %c5_96 = arith.constant 5 : index
    %236 = memref.load %arg4[%c0_95, %c5_96] : memref<3x6xf32, #tpu.memory_space<smem>>
    %237 = vector.broadcast %236 : f32 to vector<1x8xf32>
    %238 = arith.mulf %237, %210 : vector<1x8xf32>
    %239 = arith.addf %235, %238 : vector<1x8xf32>
    %c0_97 = arith.constant 0 : index
    %240 = memref.load %arg5[%c0_97] : memref<3xf32, #tpu.memory_space<smem>>
    %241 = vector.broadcast %240 : f32 to vector<1x8xf32>
    %242 = arith.addf %239, %241 : vector<1x8xf32>
    %c1_98 = arith.constant 1 : index
    %c0_99 = arith.constant 0 : index
    %243 = memref.load %arg4[%c1_98, %c0_99] : memref<3x6xf32, #tpu.memory_space<smem>>
    %244 = vector.broadcast %243 : f32 to vector<1x8xf32>
    %245 = arith.mulf %244, %212 : vector<1x8xf32>
    %c1_100 = arith.constant 1 : index
    %c1_101 = arith.constant 1 : index
    %246 = memref.load %arg4[%c1_100, %c1_101] : memref<3x6xf32, #tpu.memory_space<smem>>
    %247 = vector.broadcast %246 : f32 to vector<1x8xf32>
    %248 = arith.mulf %247, %214 : vector<1x8xf32>
    %249 = arith.addf %245, %248 : vector<1x8xf32>
    %c1_102 = arith.constant 1 : index
    %c2_103 = arith.constant 2 : index
    %250 = memref.load %arg4[%c1_102, %c2_103] : memref<3x6xf32, #tpu.memory_space<smem>>
    %251 = vector.broadcast %250 : f32 to vector<1x8xf32>
    %252 = arith.mulf %251, %216 : vector<1x8xf32>
    %253 = arith.addf %249, %252 : vector<1x8xf32>
    %c1_104 = arith.constant 1 : index
    %c3_105 = arith.constant 3 : index
    %254 = memref.load %arg4[%c1_104, %c3_105] : memref<3x6xf32, #tpu.memory_space<smem>>
    %255 = vector.broadcast %254 : f32 to vector<1x8xf32>
    %256 = arith.mulf %255, %82 : vector<1x8xf32>
    %257 = arith.addf %253, %256 : vector<1x8xf32>
    %c1_106 = arith.constant 1 : index
    %c4_107 = arith.constant 4 : index
    %258 = memref.load %arg4[%c1_106, %c4_107] : memref<3x6xf32, #tpu.memory_space<smem>>
    %259 = vector.broadcast %258 : f32 to vector<1x8xf32>
    %260 = arith.mulf %259, %146 : vector<1x8xf32>
    %261 = arith.addf %257, %260 : vector<1x8xf32>
    %c1_108 = arith.constant 1 : index
    %c5_109 = arith.constant 5 : index
    %262 = memref.load %arg4[%c1_108, %c5_109] : memref<3x6xf32, #tpu.memory_space<smem>>
    %263 = vector.broadcast %262 : f32 to vector<1x8xf32>
    %264 = arith.mulf %263, %210 : vector<1x8xf32>
    %265 = arith.addf %261, %264 : vector<1x8xf32>
    %c1_110 = arith.constant 1 : index
    %266 = memref.load %arg5[%c1_110] : memref<3xf32, #tpu.memory_space<smem>>
    %267 = vector.broadcast %266 : f32 to vector<1x8xf32>
    %268 = arith.addf %265, %267 : vector<1x8xf32>
    %c2_111 = arith.constant 2 : index
    %c0_112 = arith.constant 0 : index
    %269 = memref.load %arg4[%c2_111, %c0_112] : memref<3x6xf32, #tpu.memory_space<smem>>
    %270 = vector.broadcast %269 : f32 to vector<1x8xf32>
    %271 = arith.mulf %270, %212 : vector<1x8xf32>
    %c2_113 = arith.constant 2 : index
    %c1_114 = arith.constant 1 : index
    %272 = memref.load %arg4[%c2_113, %c1_114] : memref<3x6xf32, #tpu.memory_space<smem>>
    %273 = vector.broadcast %272 : f32 to vector<1x8xf32>
    %274 = arith.mulf %273, %214 : vector<1x8xf32>
    %275 = arith.addf %271, %274 : vector<1x8xf32>
    %c2_115 = arith.constant 2 : index
    %c2_116 = arith.constant 2 : index
    %276 = memref.load %arg4[%c2_115, %c2_116] : memref<3x6xf32, #tpu.memory_space<smem>>
    %277 = vector.broadcast %276 : f32 to vector<1x8xf32>
    %278 = arith.mulf %277, %216 : vector<1x8xf32>
    %279 = arith.addf %275, %278 : vector<1x8xf32>
    %c2_117 = arith.constant 2 : index
    %c3_118 = arith.constant 3 : index
    %280 = memref.load %arg4[%c2_117, %c3_118] : memref<3x6xf32, #tpu.memory_space<smem>>
    %281 = vector.broadcast %280 : f32 to vector<1x8xf32>
    %282 = arith.mulf %281, %82 : vector<1x8xf32>
    %283 = arith.addf %279, %282 : vector<1x8xf32>
    %c2_119 = arith.constant 2 : index
    %c4_120 = arith.constant 4 : index
    %284 = memref.load %arg4[%c2_119, %c4_120] : memref<3x6xf32, #tpu.memory_space<smem>>
    %285 = vector.broadcast %284 : f32 to vector<1x8xf32>
    %286 = arith.mulf %285, %146 : vector<1x8xf32>
    %287 = arith.addf %283, %286 : vector<1x8xf32>
    %c2_121 = arith.constant 2 : index
    %c5_122 = arith.constant 5 : index
    %288 = memref.load %arg4[%c2_121, %c5_122] : memref<3x6xf32, #tpu.memory_space<smem>>
    %289 = vector.broadcast %288 : f32 to vector<1x8xf32>
    %290 = arith.mulf %289, %210 : vector<1x8xf32>
    %291 = arith.addf %287, %290 : vector<1x8xf32>
    %c2_123 = arith.constant 2 : index
    %292 = memref.load %arg5[%c2_123] : memref<3xf32, #tpu.memory_space<smem>>
    %293 = vector.broadcast %292 : f32 to vector<1x8xf32>
    %294 = arith.addf %291, %293 : vector<1x8xf32>
    %295 = tpu.concatenate %242, %268, %294 in 0 : vector<1x8xf32>, vector<1x8xf32>, vector<1x8xf32> -> vector<3x8xf32>
    %c0_124 = arith.constant 0 : index
    %c0_125 = arith.constant 0 : index
    %296 = vector.load %arg6[%c0_124, %c0_125] : memref<3x8xf32, #tpu.memory_space<vmem>>, vector<3x8xf32>
    tpu.vector_store %arg6[%c0_124, %c0_125], %295 {strides = array<i32>} : memref<3x8xf32, #tpu.memory_space<vmem>>, vector<3x8xf32>,
    return
  }
  func.func @transform_0(%arg0: i32) -> (i32, i32) {
    %c0_i32 = arith.constant 0 : i32
    %c0_i32_0 = arith.constant 0 : i32
    return %c0_i32, %arg0 : i32, i32
  }
  func.func @transform_1(%arg0: i32) -> (i32, i32) {
    %c0_i32 = arith.constant 0 : i32
    %c0_i32_0 = arith.constant 0 : i32
    %c0_i32_1 = arith.constant 0 : i32
    return %c0_i32, %c0_i32_0 : i32, i32
  }
  func.func @transform_2(%arg0: i32) -> i32 {
    %c0_i32 = arith.constant 0 : i32
    %c0_i32_0 = arith.constant 0 : i32
    return %c0_i32 : i32
  }
  func.func @transform_3(%arg0: i32) -> (i32, i32) {
    %c0_i32 = arith.constant 0 : i32
    %c0_i32_0 = arith.constant 0 : i32
    %c0_i32_1 = arith.constant 0 : i32
    return %c0_i32, %c0_i32_0 : i32, i32
  }
  func.func @transform_4(%arg0: i32) -> i32 {
    %c0_i32 = arith.constant 0 : i32
    %c0_i32_0 = arith.constant 0 : i32
    return %c0_i32 : i32
  }
  func.func @transform_5(%arg0: i32) -> (i32, i32) {
    %c0_i32 = arith.constant 0 : i32
    %c0_i32_0 = arith.constant 0 : i32
    return %c0_i32, %arg0 : i32, i32
  }
}

</mosaic_0001>

<llo_original>
// kernel: tpu_custom_call.1
$region0: #{tpu_custom_call.1}
  #allocation0 [shape = 'u32[]', space=smem, size = 0x4, offset = 0x4, fixed_abs, tag = 'smem constant byte address 0x4 - core index']
  #allocation1 [shape = 'u32[144,128]{1,0:T(1,128)}', space=vmem, size = 0x12000, scoped, tag = 'internal scratch']
  %s0 = inlined_call_operand.vmem [shape: f32[18,8], index: 0, kind: input, shape index: {}]
  %s1 = inlined_call_operand.vmem [shape: f32[3,15], index: 1, kind: input, shape index: {}]
  %s2 = inlined_call_operand.vmem [shape: f32[3], index: 2, kind: input, shape index: {}]
  %s3 = inlined_call_operand.vmem [shape: f32[3,6], index: 3, kind: input, shape index: {}]
  %s4 = inlined_call_operand.vmem [shape: f32[3], index: 4, kind: input, shape index: {}]
  %s5 = inlined_call_operand.hbm [shape: f32[3,8], index: 5, kind: output, shape index: {}]
  %s6 = sld [smem:[#allocation0]]
  $region46: #{tpu_custom_call.1} parent=0
    _
  %s8 = ssub.s32 1, %s6
  %s9 = scalar_select 0, %s8, %s6
  $region1: #{tpu_custom_call.1} parent=0
    #allocation2 [shape = 'u8[2048]{0}', space=smem, size = 0x800, scoped, tag = 'input window, operand 1, single buffered']
    #allocation3 [shape = 's32[1]{0}', space=sflag, size = 0x4, scoped, tag = 'scoped memory for tpu_custom_call.1']
    #allocation4 [shape = 's32[1]{0}', space=sflag, size = 0x4, scoped, tag = 'scoped memory for tpu_custom_call.1']
    #allocation5 [shape = 'u8[512]{0}', space=smem, size = 0x200, scoped, tag = 'input window, operand 2, single buffered']
    #allocation6 [shape = 's32[1]{0}', space=sflag, size = 0x4, scoped, tag = 'scoped memory for tpu_custom_call.1']
    #allocation7 [shape = 'u8[2048]{0}', space=smem, size = 0x800, scoped, tag = 'input window, operand 3, single buffered']
    #allocation8 [shape = 'u8[512]{0}', space=smem, size = 0x200, scoped, tag = 'input window, operand 4, single buffered']
    #allocation9 [shape = 's32[1]{0}', space=sflag, size = 0x4, scoped, tag = 'scoped memory for tpu_custom_call.1']
    #allocation10 [shape = 'u8[2048]{0}', space=vmem, size = 0x800, scoped, tag = 'output window, operand 0, single buffered']
    %10 = vsyncpa [#allocation4], 0
    %11 = vsyncpa [#allocation6], 0
    %12 = vsyncpa [#allocation9], 0
    %13 = vsyncpa [#allocation3], 0
    // Predicated region
    $region2: #{tpu_custom_call.1} parent=1 // pred_check
      _
    $region3: #{tpu_custom_call.1} parent=1 // pred_check_branch
      %15 = sbr.rel (0) target = $region5
    $region4: #{tpu_custom_call.1} parent=1 // pred_region
      _
    $region5: #{tpu_custom_call.1} parent=1 // pred_fallthru
      _
    // Predicated region
    $region6: #{tpu_custom_call.1} parent=1 // pred_check
      _
    $region7: #{tpu_custom_call.1} parent=1 // pred_check_branch
      %17 = sbr.rel (0) target = $region9
    $region8: #{tpu_custom_call.1} parent=1 // pred_region
      %s19 = ssub.s32 64, 64
      %20 = vsyncadd [#allocation4], %s19
      %s22 = sshll.u32 %s1, 4
      %s23 = int_to_ptr.vmem [resolvable:$true] %s22
      %25 = dma.vmem_to_smem %s23, 64, [#allocation2], [#allocation4]
    $region9: #{tpu_custom_call.1} parent=1 // pred_fallthru
      _
    // Predicated region
    $region10: #{tpu_custom_call.1} parent=1 // pred_check
      _
    $region11: #{tpu_custom_call.1} parent=1 // pred_check_branch
      %27 = sbr.rel (0) target = $region13
    $region12: #{tpu_custom_call.1} parent=1 // pred_region
      %s29 = ssub.s32 16, 16
      %30 = vsyncadd [#allocation6], %s29
      %s32 = sshll.u32 %s2, 4
      %s33 = int_to_ptr.vmem [resolvable:$true] %s32
      %35 = dma.vmem_to_smem %s33, 16, [#allocation5], [#allocation6]
    $region13: #{tpu_custom_call.1} parent=1 // pred_fallthru
      _
    // Predicated region
    $region14: #{tpu_custom_call.1} parent=1 // pred_check
      _
    $region15: #{tpu_custom_call.1} parent=1 // pred_check_branch
      %37 = sbr.rel (0) target = $region17
    $region16: #{tpu_custom_call.1} parent=1 // pred_region
      %s39 = ssub.s32 64, 64
      %40 = vsyncadd [#allocation6], %s39
      %s42 = sshll.u32 %s3, 4
      %s43 = int_to_ptr.vmem [resolvable:$true] %s42
      %45 = dma.vmem_to_smem %s43, 64, [#allocation7], [#allocation6]
    $region17: #{tpu_custom_call.1} parent=1 // pred_fallthru
      _
    // Predicated region
    $region18: #{tpu_custom_call.1} parent=1 // pred_check
      _
    $region19: #{tpu_custom_call.1} parent=1 // pred_check_branch
      %47 = sbr.rel (0) target = $region21
    $region20: #{tpu_custom_call.1} parent=1 // pred_region
      %s49 = ssub.s32 16, 16
      %50 = vsyncadd [#allocation9], %s49
      %s52 = sshll.u32 %s4, 4
      %s53 = int_to_ptr.vmem [resolvable:$true] %s52
      %55 = dma.vmem_to_smem %s53, 16, [#allocation8], [#allocation9]
    $region21: #{tpu_custom_call.1} parent=1 // pred_fallthru
      _
    // Predicated region
    $region22: #{tpu_custom_call.1} parent=1 // pred_check
      _
    $region23: #{tpu_custom_call.1} parent=1 // pred_check_branch
      %57 = sbr.rel (0) target = $region25
    $region24: #{tpu_custom_call.1} parent=1 // pred_region
      %58 = dma.done [#allocation4], 64
    $region25: #{tpu_custom_call.1} parent=1 // pred_fallthru
      _
    // Predicated region
    $region26: #{tpu_custom_call.1} parent=1 // pred_check
      _
    $region27: #{tpu_custom_call.1} parent=1 // pred_check_branch
      %60 = sbr.rel (0) target = $region29
    $region28: #{tpu_custom_call.1} parent=1 // pred_region
      %61 = dma.done [#allocation6], 16
    $region29: #{tpu_custom_call.1} parent=1 // pred_fallthru
      _
    // Predicated region
    $region30: #{tpu_custom_call.1} parent=1 // pred_check
      _
    $region31: #{tpu_custom_call.1} parent=1 // pred_check_branch
      %63 = sbr.rel (0) target = $region33
    $region32: #{tpu_custom_call.1} parent=1 // pred_region
      %64 = dma.done [#allocation6], 64
    $region33: #{tpu_custom_call.1} parent=1 // pred_fallthru
      _
    // Predicated region
    $region34: #{tpu_custom_call.1} parent=1 // pred_check
      _
    $region35: #{tpu_custom_call.1} parent=1 // pred_check_branch
      %66 = sbr.rel (0) target = $region37
    $region36: #{tpu_custom_call.1} parent=1 // pred_region
      %67 = dma.done [#allocation9], 16
    $region37: #{tpu_custom_call.1} parent=1 // pred_fallthru
      _
    %68 = sfence
    %v69 = vld [vmem:[%s0] sm:$0xff]
    %v70 = vld [vmem:[%s0 + $0x8] sm:$0xff]
    %v71 = vld [vmem:[%s0 + $0x10] sm:$0x3]
    %s72 = sld [smem:[#allocation2]]
    %v73 = vstv %s72
    %v74 = vmul.f32 %v73, %v69
    %s75 = sld [smem:[#allocation2 + $0x1]]
    %v76 = vstv %s75
    %v77 = vmul.f32 %v76, %v69
    %v79 = vrot.slane %v77, 1
    %v81 = vadd.f32 %v74, %v79
    %s82 = sld [smem:[#allocation2 + $0x2]]
    %v83 = vstv %s82
    %v84 = vmul.f32 %v83, %v69
    %v86 = vrot.slane %v84, 2
    %v88 = vadd.f32 %v81, %v86
    %s89 = sld [smem:[#allocation2 + $0x3]]
    %v90 = vstv %s89
    %v91 = vmul.f32 %v90, %v69
    %v93 = vrot.slane %v91, 3
    %v95 = vadd.f32 %v88, %v93
    %s96 = sld [smem:[#allocation2 + $0x4]]
    %v97 = vstv %s96
    %v98 = vmul.f32 %v97, %v69
    %v100 = vrot.slane %v98, 4
    %v102 = vadd.f32 %v95, %v100
    %s103 = sld [smem:[#allocation2 + $0x5]]
    %v104 = vstv %s103
    %v105 = vmul.f32 %v104, %v70
    %v107 = vrot.slane %v105, 5
    %v109 = vadd.f32 %v102, %v107
    %s110 = sld [smem:[#allocation2 + $0x6]]
    %v111 = vstv %s110
    %v112 = vmul.f32 %v111, %v70
    %v114 = vrot.slane %v112, 6
    %v116 = vadd.f32 %v109, %v114
    %s117 = sld [smem:[#allocation2 + $0x7]]
    %v118 = vstv %s117
    %v119 = vmul.f32 %v118, %v70
    %v121 = vrot.slane %v119, 7
    %v123 = vadd.f32 %v116, %v121
    %s124 = sld [smem:[#allocation2 + $0x8]]
    %v125 = vstv %s124
    %v126 = vmul.f32 %v125, %v70
    %v127 = vadd.f32 %v123, %v126
    %s128 = sld [smem:[#allocation2 + $0x9]]
    %v129 = vstv %s128
    %v130 = vmul.f32 %v129, %v70
    %v132 = vrot.slane %v130, 1
    %v134 = vadd.f32 %v127, %v132
    %s135 = sld [smem:[#allocation2 + $0xa]]
    %v136 = vstv %s135
    %v137 = vmul.f32 %v136, %v70
    %v139 = vrot.slane %v137, 2
    %v141 = vadd.f32 %v134, %v139
    %s142 = sld [smem:[#allocation2 + $0xb]]
    %v143 = vstv %s142
    %v144 = vmul.f32 %v143, %v70
    %v146 = vrot.slane %v144, 3
    %v148 = vadd.f32 %v141, %v146
    %s149 = sld [smem:[#allocation2 + $0xc]]
    %v150 = vstv %s149
    %v151 = vmul.f32 %v150, %v70
    %v153 = vrot.slane %v151, 4
    %v155 = vadd.f32 %v148, %v153
    %s156 = sld [smem:[#allocation2 + $0xd]]
    %v157 = vstv %s156
    %v158 = vmul.f32 %v157, %v71
    %v160 = vrot.slane %v158, 5
    %v162 = vadd.f32 %v155, %v160
    %s163 = sld [smem:[#allocation2 + $0xe]]
    %v164 = vstv %s163
    %v165 = vmul.f32 %v164, %v71
    %v167 = vrot.slane %v165, 6
    %v169 = vadd.f32 %v162, %v167
    %s170 = sld [smem:[#allocation5]]
    %v171 = vstv %s170
    %v172 = vadd.f32 %v169, %v171
    %v173 = vmax.f32 %v172, 0.0
    %s174 = sld [smem:[#allocation2 + $0x80]]
    %v175 = vstv %s174
    %v176 = vmul.f32 %v175, %v69
    %s177 = sld [smem:[#allocation2 + $0x81]]
    %v178 = vstv %s177
    %v179 = vmul.f32 %v178, %v69
    %v181 = vrot.slane %v179, 1
    %v183 = vadd.f32 %v176, %v181
    %s184 = sld [smem:[#allocation2 + $0x82]]
    %v185 = vstv %s184
    %v186 = vmul.f32 %v185, %v69
    %v188 = vrot.slane %v186, 2
    %v190 = vadd.f32 %v183, %v188
    %s191 = sld [smem:[#allocation2 + $0x83]]
    %v192 = vstv %s191
    %v193 = vmul.f32 %v192, %v69
    %v195 = vrot.slane %v193, 3
    %v197 = vadd.f32 %v190, %v195
    %s198 = sld [smem:[#allocation2 + $0x84]]
    %v199 = vstv %s198
    %v200 = vmul.f32 %v199, %v69
    %v202 = vrot.slane %v200, 4
    %v204 = vadd.f32 %v197, %v202
    %s205 = sld [smem:[#allocation2 + $0x85]]
    %v206 = vstv %s205
    %v207 = vmul.f32 %v206, %v70
    %v209 = vrot.slane %v207, 5
    %v211 = vadd.f32 %v204, %v209
    %s212 = sld [smem:[#allocation2 + $0x86]]
    %v213 = vstv %s212
    %v214 = vmul.f32 %v213, %v70
    %v216 = vrot.slane %v214, 6
    %v218 = vadd.f32 %v211, %v216
    %s219 = sld [smem:[#allocation2 + $0x87]]
    %v220 = vstv %s219
    %v221 = vmul.f32 %v220, %v70
    %v223 = vrot.slane %v221, 7
    %v225 = vadd.f32 %v218, %v223
    %s226 = sld [smem:[#allocation2 + $0x88]]
    %v227 = vstv %s226
    %v228 = vmul.f32 %v227, %v70
    %v229 = vadd.f32 %v225, %v228
    %s230 = sld [smem:[#allocation2 + $0x89]]
    %v231 = vstv %s230
    %v232 = vmul.f32 %v231, %v70
    %v234 = vrot.slane %v232, 1
    %v236 = vadd.f32 %v229, %v234
    %s237 = sld [smem:[#allocation2 + $0x8a]]
    %v238 = vstv %s237
    %v239 = vmul.f32 %v238, %v70
    %v241 = vrot.slane %v239, 2
    %v243 = vadd.f32 %v236, %v241
    %s244 = sld [smem:[#allocation2 + $0x8b]]
    %v245 = vstv %s244
    %v246 = vmul.f32 %v245, %v70
    %v248 = vrot.slane %v246, 3
    %v250 = vadd.f32 %v243, %v248
    %s251 = sld [smem:[#allocation2 + $0x8c]]
    %v252 = vstv %s251
    %v253 = vmul.f32 %v252, %v70
    %v255 = vrot.slane %v253, 4
    %v257 = vadd.f32 %v250, %v255
    %s258 = sld [smem:[#allocation2 + $0x8d]]
    %v259 = vstv %s258
    %v260 = vmul.f32 %v259, %v71
    %v262 = vrot.slane %v260, 5
    %v264 = vadd.f32 %v257, %v262
    %s265 = sld [smem:[#allocation2 + $0x8e]]
    %v266 = vstv %s265
    %v267 = vmul.f32 %v266, %v71
    %v269 = vrot.slane %v267, 6
    %v271 = vadd.f32 %v264, %v269
    %s272 = sld [smem:[#allocation5 + $0x1]]
    %v273 = vstv %s272
    %v274 = vadd.f32 %v271, %v273
    %v275 = vmax.f32 %v274, 0.0
    %s276 = sld [smem:[#allocation2 + $0x100]]
    %v277 = vstv %s276
    %v278 = vmul.f32 %v277, %v69
    %s279 = sld [smem:[#allocation2 + $0x101]]
    %v280 = vstv %s279
    %v281 = vmul.f32 %v280, %v69
    %v283 = vrot.slane %v281, 1
    %v285 = vadd.f32 %v278, %v283
    %s286 = sld [smem:[#allocation2 + $0x102]]
    %v287 = vstv %s286
    %v288 = vmul.f32 %v287, %v69
    %v290 = vrot.slane %v288, 2
    %v292 = vadd.f32 %v285, %v290
    %s293 = sld [smem:[#allocation2 + $0x103]]
    %v294 = vstv %s293
    %v295 = vmul.f32 %v294, %v69
    %v297 = vrot.slane %v295, 3
    %v299 = vadd.f32 %v292, %v297
    %s300 = sld [smem:[#allocation2 + $0x104]]
    %v301 = vstv %s300
    %v302 = vmul.f32 %v301, %v69
    %v304 = vrot.slane %v302, 4
    %v306 = vadd.f32 %v299, %v304
    %s307 = sld [smem:[#allocation2 + $0x105]]
    %v308 = vstv %s307
    %v309 = vmul.f32 %v308, %v70
    %v311 = vrot.slane %v309, 5
    %v313 = vadd.f32 %v306, %v311
    %s314 = sld [smem:[#allocation2 + $0x106]]
    %v315 = vstv %s314
    %v316 = vmul.f32 %v315, %v70
    %v318 = vrot.slane %v316, 6
    %v320 = vadd.f32 %v313, %v318
    %s321 = sld [smem:[#allocation2 + $0x107]]
    %v322 = vstv %s321
    %v323 = vmul.f32 %v322, %v70
    %v325 = vrot.slane %v323, 7
    %v327 = vadd.f32 %v320, %v325
    %s328 = sld [smem:[#allocation2 + $0x108]]
    %v329 = vstv %s328
    %v330 = vmul.f32 %v329, %v70
    %v331 = vadd.f32 %v327, %v330
    %s332 = sld [smem:[#allocation2 + $0x109]]
    %v333 = vstv %s332
    %v334 = vmul.f32 %v333, %v70
    %v336 = vrot.slane %v334, 1
    %v338 = vadd.f32 %v331, %v336
    %s339 = sld [smem:[#allocation2 + $0x10a]]
    %v340 = vstv %s339
    %v341 = vmul.f32 %v340, %v70
    %v343 = vrot.slane %v341, 2
    %v345 = vadd.f32 %v338, %v343
    %s346 = sld [smem:[#allocation2 + $0x10b]]
    %v347 = vstv %s346
    %v348 = vmul.f32 %v347, %v70
    %v350 = vrot.slane %v348, 3
    %v352 = vadd.f32 %v345, %v350
    %s353 = sld [smem:[#allocation2 + $0x10c]]
    %v354 = vstv %s353
    %v355 = vmul.f32 %v354, %v70
    %v357 = vrot.slane %v355, 4
    %v359 = vadd.f32 %v352, %v357
    %s360 = sld [smem:[#allocation2 + $0x10d]]
    %v361 = vstv %s360
    %v362 = vmul.f32 %v361, %v71
    %v364 = vrot.slane %v362, 5
    %v366 = vadd.f32 %v359, %v364
    %s367 = sld [smem:[#allocation2 + $0x10e]]
    %v368 = vstv %s367
    %v369 = vmul.f32 %v368, %v71
    %v371 = vrot.slane %v369, 6
    %v373 = vadd.f32 %v366, %v371
    %s374 = sld [smem:[#allocation5 + $0x2]]
    %v375 = vstv %s374
    %v376 = vadd.f32 %v373, %v375
    %v377 = vmax.f32 %v376, 0.0
    %v378 = vmax.f32 %v69, 0.0
    %s379 = sld [smem:[#allocation7]]
    %v380 = vstv %s379
    %v381 = vmul.f32 %v380, %v378
    %s382 = sld [smem:[#allocation7 + $0x1]]
    %v383 = vstv %s382
    %v384 = vmul.f32 %v383, %v378
    %v386 = vrot.slane %v384, 1
    %v388 = vadd.f32 %v381, %v386
    %s389 = sld [smem:[#allocation7 + $0x2]]
    %v390 = vstv %s389
    %v391 = vmul.f32 %v390, %v378
    %v393 = vrot.slane %v391, 2
    %v395 = vadd.f32 %v388, %v393
    %s396 = sld [smem:[#allocation7 + $0x3]]
    %v397 = vstv %s396
    %v398 = vmul.f32 %v397, %v173
    %v400 = vrot.slane %v398, 3
    %v402 = vadd.f32 %v395, %v400
    %s403 = sld [smem:[#allocation7 + $0x4]]
    %v404 = vstv %s403
    %v405 = vmul.f32 %v404, %v275
    %v407 = vrot.slane %v405, 3
    %v409 = vadd.f32 %v402, %v407
    %s410 = sld [smem:[#allocation7 + $0x5]]
    %v411 = vstv %s410
    %v412 = vmul.f32 %v411, %v377
    %v414 = vrot.slane %v412, 3
    %v416 = vadd.f32 %v409, %v414
    %s417 = sld [smem:[#allocation8]]
    %v418 = vstv %s417
    %v419 = vadd.f32 %v416, %v418
    %s420 = sld [smem:[#allocation7 + $0x80]]
    %v421 = vstv %s420
    %v422 = vmul.f32 %v421, %v378
    %s423 = sld [smem:[#allocation7 + $0x81]]
    %v424 = vstv %s423
    %v425 = vmul.f32 %v424, %v378
    %v427 = vrot.slane %v425, 1
    %v429 = vadd.f32 %v422, %v427
    %s430 = sld [smem:[#allocation7 + $0x82]]
    %v431 = vstv %s430
    %v432 = vmul.f32 %v431, %v378
    %v434 = vrot.slane %v432, 2
    %v436 = vadd.f32 %v429, %v434
    %s437 = sld [smem:[#allocation7 + $0x83]]
    %v438 = vstv %s437
    %v439 = vmul.f32 %v438, %v173
    %v441 = vrot.slane %v439, 3
    %v443 = vadd.f32 %v436, %v441
    %s444 = sld [smem:[#allocation7 + $0x84]]
    %v445 = vstv %s444
    %v446 = vmul.f32 %v445, %v275
    %v448 = vrot.slane %v446, 3
    %v450 = vadd.f32 %v443, %v448
    %s451 = sld [smem:[#allocation7 + $0x85]]
    %v452 = vstv %s451
    %v453 = vmul.f32 %v452, %v377
    %v455 = vrot.slane %v453, 3
    %v457 = vadd.f32 %v450, %v455
    %s458 = sld [smem:[#allocation8 + $0x1]]
    %v459 = vstv %s458
    %v460 = vadd.f32 %v457, %v459
    %s461 = sld [smem:[#allocation7 + $0x100]]
    %v462 = vstv %s461
    %v463 = vmul.f32 %v462, %v378
    %s464 = sld [smem:[#allocation7 + $0x101]]
    %v465 = vstv %s464
    %v466 = vmul.f32 %v465, %v378
    %v468 = vrot.slane %v466, 1
    %v470 = vadd.f32 %v463, %v468
    %s471 = sld [smem:[#allocation7 + $0x102]]
    %v472 = vstv %s471
    %v473 = vmul.f32 %v472, %v378
    %v475 = vrot.slane %v473, 2
    %v477 = vadd.f32 %v470, %v475
    %s478 = sld [smem:[#allocation7 + $0x103]]
    %v479 = vstv %s478
    %v480 = vmul.f32 %v479, %v173
    %v482 = vrot.slane %v480, 3
    %v484 = vadd.f32 %v477, %v482
    %s485 = sld [smem:[#allocation7 + $0x104]]
    %v486 = vstv %s485
    %v487 = vmul.f32 %v486, %v275
    %v489 = vrot.slane %v487, 3
    %v491 = vadd.f32 %v484, %v489
    %s492 = sld [smem:[#allocation7 + $0x105]]
    %v493 = vstv %s492
    %v494 = vmul.f32 %v493, %v377
    %v496 = vrot.slane %v494, 3
    %v498 = vadd.f32 %v491, %v496
    %s499 = sld [smem:[#allocation8 + $0x2]]
    %v500 = vstv %s499
    %v501 = vadd.f32 %v498, %v500
    %v503 = vrot.slane %v460, 7
    %v506 = vrot.slane %v501, 6
    %vm508 = vcmask 1040384
    %v509 = vsel %vm508, %v419, %v503
    %vm510 = vcmask 1041408
    %v511 = vsel %vm510, %v509, %v506
    %vm512 = vcmask 59392
    %513 = vst.msk [vmem:[#allocation10] sm:$0x7] %vm512, %v511
    // Predicated region
    $region38: #{tpu_custom_call.1} parent=1 // pred_check
      _
    $region39: #{tpu_custom_call.1} parent=1 // pred_check_branch
      %515 = sbr.rel (0) target = $region41
    $region40: #{tpu_custom_call.1} parent=1 // pred_region
      %s517 = ssub.s32 64, 64
      %518 = vsyncadd [#allocation3], %s517
      %s520 = sshll.u32 [#allocation10], 4
      %s521 = int_to_ptr.vmem [resolvable:$true] %s520
      %523 = dma.vmem_to_hbm [thread:$0]  %s521, 64, %s5, [#allocation3]
    $region41: #{tpu_custom_call.1} parent=1 // pred_fallthru
      _
    // Predicated region
    $region42: #{tpu_custom_call.1} parent=1 // pred_check
      _
    $region43: #{tpu_custom_call.1} parent=1 // pred_check_branch
      %525 = sbr.rel (0) target = $region45
    $region44: #{tpu_custom_call.1} parent=1 // pred_region
      %526 = dma.done [#allocation3], 64
    $region45: #{tpu_custom_call.1} parent=1 // pred_fallthru
      _
    %527 = vsyncpa [#allocation3], 1
    %528 = vsyncpa [#allocation4], 1
    %529 = vsyncpa [#allocation6], 1
    %530 = vsyncpa [#allocation9], 1

</llo_original>
